<compile_context>
chip_gen: v5e
topology: v5e:2x2
jax: 0.10.0
libtpu: 0.0.40
codegen_flags: <defaults>
</compile_context>

<pallas_src>
import functools

import jax
import jax.numpy as jnp
from jax.experimental import pallas as pl
from jax.experimental.pallas import tpu as pltpu


def _interaction_kernel(h_ref, s_ref, r_ref, wh_ref, ws_ref, wr_ref, b_ref,
                        o_ref, *, compute_dtype=None):
    h = h_ref[...]
    s = s_ref[...]
    r = r_ref[...]
    if compute_dtype is not None:
        # In-kernel cast on the VMEM tile: MXU fast path, no extra HBM pass.
        h = h.astype(compute_dtype)
        s = s.astype(compute_dtype)
        r = r.astype(compute_dtype)
    # Three MXU matmuls sharing one f32 accumulator (weights pre-transposed,
    # so no in-kernel .T / XLU relayout).
    acc = jnp.dot(h, wh_ref[...], preferred_element_type=jnp.float32)
    acc = acc + jnp.dot(s, ws_ref[...], preferred_element_type=jnp.float32)
    acc = acc + jnp.dot(r, wr_ref[...], preferred_element_type=jnp.float32)
    acc = acc + b_ref[...]          # (1, tn) broadcasts over (bb, tn)
    o_ref[...] = jnp.tanh(acc).astype(o_ref.dtype)   # tanh on the EUP


def prepare_interaction_params(w_h, w_s, w_ru, b_int, *, param_dtype=None):
    """Hoisted (call-once) parameter preparation.

    w_h, w_s, w_ru : [H, H] nn.Linear weights in PyTorch [out, in] layout.
    b_int          : [H] bias.
    param_dtype    : optional weight storage dtype (e.g. bf16) for the MXU
                     fast path / halved weight VMEM. Accumulation stays f32.
    """
    wh_t = w_h.T
    ws_t = w_s.T
    wr_t = w_ru.T
    if param_dtype is not None:
        wh_t = wh_t.astype(param_dtype)
        ws_t = ws_t.astype(param_dtype)
        wr_t = wr_t.astype(param_dtype)
    b = b_int.reshape(1, -1).astype(jnp.float32)
    return wh_t, ws_t, wr_t, b


def interaction_module_stgn(h_tilde, s_t, r_u, params, *,
                            block_b=1024, block_n=512, compute_dtype=None):
    """Fused forward for InteractionModuleSTGN.

    h_tilde, s_t, r_u : [B, H] activations
    params            : output of prepare_interaction_params (cached once)
    """
    wh_t, ws_t, wr_t, b = params
    B, H = h_tilde.shape
    out_dtype = h_tilde.dtype

    # ---- batch (row) tile ------------------------------------------------
    bb = min(block_b, B)
    if bb < B:
        bb = max(8, (bb // 8) * 8)                 # non-final tiles sublane-aligned
    elif B >= 16:
        # Keep the grid >= 2 row-steps so both v7x TensorCores get work.
        bb = max(8, (((B + 1) // 2 + 7) // 8) * 8)
    num_b = pl.cdiv(B, bb)

    # ---- output-column tile (weight streaming for large H) ---------------
    if H % 128 == 0:
        tn = max(128, (min(block_n, H) // 128) * 128)
    else:
        tn = H      # full-dim block (allowed); prefer H % 128 == 0 for dense vst
    num_n = pl.cdiv(H, tn)
    weights_resident = (num_n == 1)

    w_itemsize = jnp.dtype(wh_t.dtype).itemsize
    act_itemsize = jnp.dtype(h_tilde.dtype).itemsize
    out_itemsize = jnp.dtype(out_dtype).itemsize
    w_bytes_total = 3 * H * H * w_itemsize

    # Single-buffer a large resident weight (constant index_map => double
    # buffering buys nothing and doubles the dominant VMEM consumer).
    if weights_resident and w_bytes_total > (4 << 20):
        w_kwargs = dict(pipeline_mode=pl.Buffered(1))
        n_wbuf = 1
    else:
        w_kwargs = {}
        n_wbuf = 2

    # ---- VMEM budget / compiler params ------------------------------------
    vmem_need = (3 * 2 * bb * H * act_itemsize            # activations, double-buffered
                 + n_wbuf * 3 * H * tn * w_itemsize       # weights
                 + n_wbuf * 8 * max(tn, 128) * 4          # bias tile (padded)
                 + 2 * bb * tn * out_itemsize)            # output, double-buffered
    compiler_kwargs = dict(dimension_semantics=("parallel", "parallel"))
    if vmem_need > (32 << 20):
        compiler_kwargs["vmem_limit_bytes"] = int(
            min(vmem_need * 5 // 4 + (1 << 20), 100 << 20))

    cost = pl.CostEstimate(
        flops=2 * 3 * B * H * H,
        transcendentals=B * H,
        bytes_accessed=(3 * B * H * act_itemsize
                        + w_bytes_total
                        + H * 4
                        + B * H * out_itemsize),
    )

    kernel = functools.partial(_interaction_kernel, compute_dtype=compute_dtype)

    out = pl.pallas_call(
        kernel,
        out_shape=jax.ShapeDtypeStruct((B, H), out_dtype),
        grid=(num_b, num_n),
        in_specs=[
            pl.BlockSpec((bb, H), lambda i, j: (i, 0)),              # h_tilde rows
            pl.BlockSpec((bb, H), lambda i, j: (i, 0)),              # s_t rows
            pl.BlockSpec((bb, H), lambda i, j: (i, 0)),              # r_u rows
            pl.BlockSpec((H, tn), lambda i, j: (0, j), **w_kwargs),  # W_h^T
            pl.BlockSpec((H, tn), lambda i, j: (0, j), **w_kwargs),  # W_s^T
            pl.BlockSpec((H, tn), lambda i, j: (0, j), **w_kwargs),  # W_ru^T
            pl.BlockSpec((1, tn), lambda i, j: (0, j), **w_kwargs),  # bias
        ],
        out_specs=pl.BlockSpec((bb, tn), lambda i, j: (i, j)),
        compiler_params=pltpu.CompilerParams(**compiler_kwargs),
        cost_estimate=cost,
    )(h_tilde, s_t, r_u, wh_t, ws_t, wr_t, b)

    return out


def _reference(h_tilde, s_t, r_u, w_h, w_s, w_ru, b_int):
    return jnp.tanh(h_tilde @ w_h.T + s_t @ w_s.T + r_u @ w_ru.T + b_int)


if __name__ == "__main__":
    batch, hidden = 8, 32

    key = jax.random.PRNGKey(0)
    k_h, k_s, k_r, k_wh, k_ws, k_wr = jax.random.split(key, 6)

    h_tilde = jax.random.normal(k_h, (batch, hidden), dtype=jnp.float32)
    s_t = jax.random.normal(k_s, (batch, hidden), dtype=jnp.float32)
    r_u = jax.random.normal(k_r, (batch, hidden), dtype=jnp.float32)

    # nn.Linear-like uniform(-1/sqrt(H), 1/sqrt(H)) init; bias = zeros.
    bound = 1.0 / jnp.sqrt(jnp.float32(hidden))
    w_h = jax.random.uniform(k_wh, (hidden, hidden), jnp.float32, -bound, bound)
    w_s = jax.random.uniform(k_ws, (hidden, hidden), jnp.float32, -bound, bound)
    w_ru = jax.random.uniform(k_wr, (hidden, hidden), jnp.float32, -bound, bound)
    b_int = jnp.zeros((hidden,), dtype=jnp.float32)

    # Parameter prep is done ONCE (module init), not per forward call.
    params = prepare_interaction_params(w_h, w_s, w_ru, b_int)

    out = interaction_module_stgn(h_tilde, s_t, r_u, params)
    out = jax.block_until_ready(out)

    ref = _reference(h_tilde, s_t, r_u, w_h, w_s, w_ru, b_int)
    assert out.shape == (batch, hidden)
    assert jnp.allclose(out, ref, atol=1e-5, rtol=1e-5), "mismatch vs reference"

    print("KERNEL_OK")
</pallas_src>

<mosaic_0001>
module attributes {stable_mosaic.version = 11 : i64} {
  func.func @_interaction_kernel(%arg0: i32, %arg1: i32, %arg2: memref<8x32xf32, #tpu.memory_space<vmem>>, %arg3: memref<8x32xf32, #tpu.memory_space<vmem>>, %arg4: memref<8x32xf32, #tpu.memory_space<vmem>>, %arg5: memref<32x32xf32, #tpu.memory_space<vmem>>, %arg6: memref<32x32xf32, #tpu.memory_space<vmem>>, %arg7: memref<32x32xf32, #tpu.memory_space<vmem>>, %arg8: memref<1x32xf32, #tpu.memory_space<vmem>>, %arg9: memref<8x32xf32, #tpu.memory_space<vmem>>) attributes {dimension_semantics = [#tpu.dimension_semantics<parallel>, #tpu.dimension_semantics<parallel>], iteration_bounds = array<i64: 1, 1>, scalar_prefetch = 0 : i64, scratch_operands = 0 : i64, tpu.core_type = #tpu.core_type<tc>, window_params = [{transform_indices = @transform_0, window_bounds = array<i64: 8, 32>}, {transform_indices = @transform_1, window_bounds = array<i64: 8, 32>}, {transform_indices = @transform_2, window_bounds = array<i64: 8, 32>}, {transform_indices = @transform_3, window_bounds = array<i64: 32, 32>}, {transform_indices = @transform_4, window_bounds = array<i64: 32, 32>}, {transform_indices = @transform_5, window_bounds = array<i64: 32, 32>}, {transform_indices = @transform_6, window_bounds = array<i64: 1, 32>}, {transform_indices = @transform_7, window_bounds = array<i64: 8, 32>}]} {
    %c0 = arith.constant 0 : index
    %c0_0 = arith.constant 0 : index
    %0 = vector.load %arg2[%c0, %c0_0] : memref<8x32xf32, #tpu.memory_space<vmem>>, vector<8x32xf32>
    %c0_1 = arith.constant 0 : index
    %c0_2 = arith.constant 0 : index
    %1 = vector.load %arg3[%c0_1, %c0_2] : memref<8x32xf32, #tpu.memory_space<vmem>>, vector<8x32xf32>
    %c0_3 = arith.constant 0 : index
    %c0_4 = arith.constant 0 : index
    %2 = vector.load %arg4[%c0_3, %c0_4] : memref<8x32xf32, #tpu.memory_space<vmem>>, vector<8x32xf32>
    %c0_5 = arith.constant 0 : index
    %c0_6 = arith.constant 0 : index
    %3 = vector.load %arg5[%c0_5, %c0_6] : memref<32x32xf32, #tpu.memory_space<vmem>>, vector<32x32xf32>
    %cst = arith.constant dense<0.000000e+00> : vector<8x32xf32>
    %4 = tpu.matmul %0, %3, %cst {dimension_numbers = #tpu.dot_dimension_numbers<[1], [0], [0], [1], [0, 0, 1, 1], [], []>} : vector<8x32xf32>, vector<32x32xf32>, vector<8x32xf32> -> vector<8x32xf32>
    %c0_7 = arith.constant 0 : index
    %c0_8 = arith.constant 0 : index
    %5 = vector.load %arg6[%c0_7, %c0_8] : memref<32x32xf32, #tpu.memory_space<vmem>>, vector<32x32xf32>
    %cst_9 = arith.constant dense<0.000000e+00> : vector<8x32xf32>
    %6 = tpu.matmul %1, %5, %cst_9 {dimension_numbers = #tpu.dot_dimension_numbers<[1], [0], [0], [1], [0, 0, 1, 1], [], []>} : vector<8x32xf32>, vector<32x32xf32>, vector<8x32xf32> -> vector<8x32xf32>
    %7 = arith.addf %4, %6 : vector<8x32xf32>
    %c0_10 = arith.constant 0 : index
    %c0_11 = arith.constant 0 : index
    %8 = vector.load %arg7[%c0_10, %c0_11] : memref<32x32xf32, #tpu.memory_space<vmem>>, vector<32x32xf32>
    %cst_12 = arith.constant dense<0.000000e+00> : vector<8x32xf32>
    %9 = tpu.matmul %2, %8, %cst_12 {dimension_numbers = #tpu.dot_dimension_numbers<[1], [0], [0], [1], [0, 0, 1, 1], [], []>} : vector<8x32xf32>, vector<32x32xf32>, vector<8x32xf32> -> vector<8x32xf32>
    %10 = arith.addf %7, %9 : vector<8x32xf32>
    %c0_13 = arith.constant 0 : index
    %c0_14 = arith.constant 0 : index
    %11 = vector.load %arg8[%c0_13, %c0_14] : memref<1x32xf32, #tpu.memory_space<vmem>>, vector<1x32xf32>
    %12 = vector.broadcast %11 : vector<1x32xf32> to vector<8x32xf32>
    %13 = arith.addf %10, %12 : vector<8x32xf32>
    %14 = math.tanh %13 : vector<8x32xf32>
    %c0_15 = arith.constant 0 : index
    %c0_16 = arith.constant 0 : index
    %15 = vector.load %arg9[%c0_15, %c0_16] : memref<8x32xf32, #tpu.memory_space<vmem>>, vector<8x32xf32>
    tpu.vector_store %arg9[%c0_15, %c0_16], %14 {strides = array<i32>} : memref<8x32xf32, #tpu.memory_space<vmem>>, vector<8x32xf32>,
    return
  }
  func.func @transform_0(%arg0: i32, %arg1: i32) -> (i32, i32) {
    %c0_i32 = arith.constant 0 : i32
    %c0_i32_0 = arith.constant 0 : i32
    return %arg0, %c0_i32 : i32, i32
  }
  func.func @transform_1(%arg0: i32, %arg1: i32) -> (i32, i32) {
    %c0_i32 = arith.constant 0 : i32
    %c0_i32_0 = arith.constant 0 : i32
    return %arg0, %c0_i32 : i32, i32
  }
  func.func @transform_2(%arg0: i32, %arg1: i32) -> (i32, i32) {
    %c0_i32 = arith.constant 0 : i32
    %c0_i32_0 = arith.constant 0 : i32
    return %arg0, %c0_i32 : i32, i32
  }
  func.func @transform_3(%arg0: i32, %arg1: i32) -> (i32, i32) {
    %c0_i32 = arith.constant 0 : i32
    %c0_i32_0 = arith.constant 0 : i32
    return %c0_i32, %arg1 : i32, i32
  }
  func.func @transform_4(%arg0: i32, %arg1: i32) -> (i32, i32) {
    %c0_i32 = arith.constant 0 : i32
    %c0_i32_0 = arith.constant 0 : i32
    return %c0_i32, %arg1 : i32, i32
  }
  func.func @transform_5(%arg0: i32, %arg1: i32) -> (i32, i32) {
    %c0_i32 = arith.constant 0 : i32
    %c0_i32_0 = arith.constant 0 : i32
    return %c0_i32, %arg1 : i32, i32
  }
  func.func @transform_6(%arg0: i32, %arg1: i32) -> (i32, i32) {
    %c0_i32 = arith.constant 0 : i32
    %c0_i32_0 = arith.constant 0 : i32
    return %c0_i32, %arg1 : i32, i32
  }
  func.func @transform_7(%arg0: i32, %arg1: i32) -> (i32, i32) {
    %c0_i32 = arith.constant 0 : i32
    return %arg0, %arg1 : i32, i32
  }
}

</mosaic_0001>

<llo_original>
// kernel: tpu_custom_call.1
$region0: #{tpu_custom_call.1}
  #allocation0 [shape = 'u32[]', space=smem, size = 0x4, offset = 0x4, fixed_abs, tag = 'smem constant byte address 0x4 - core index']
  #allocation1 [shape = 'u32[72,128]{1,0:T(1,128)}', space=vmem, size = 0x9000, scoped, tag = 'internal scratch']
  %s0 = inlined_call_operand.hbm [shape: f32[8,32], index: 0, kind: input, shape index: {}]
  %s1 = inlined_call_operand.hbm [shape: f32[8,32], index: 1, kind: input, shape index: {}]
  %s2 = inlined_call_operand.hbm [shape: f32[8,32], index: 2, kind: input, shape index: {}]
  %s3 = inlined_call_operand.hbm [shape: f32[32,32], index: 3, kind: input, shape index: {}]
  %s4 = inlined_call_operand.hbm [shape: f32[32,32], index: 4, kind: input, shape index: {}]
  %s5 = inlined_call_operand.hbm [shape: f32[32,32], index: 5, kind: input, shape index: {}]
  %s6 = inlined_call_operand.vmem [shape: f32[1,32], index: 6, kind: input, shape index: {}]
  %s7 = inlined_call_operand.hbm [shape: f32[8,32], index: 7, kind: output, shape index: {}]
  %s8 = sld [smem:[#allocation0]]
  $region62: #{tpu_custom_call.1} parent=0
    _
  %s10 = ssub.s32 1, %s8
  %s11 = scalar_select 0, %s10, %s8
  $region1: #{tpu_custom_call.1} parent=0
    #allocation2 [shape = 'u8[4096]{0}', space=vmem, size = 0x1000, scoped, tag = 'input window, operand 0, single buffered']
    #allocation3 [shape = 's32[1]{0}', space=sflag, size = 0x4, scoped, tag = 'scoped memory for tpu_custom_call.1']
    #allocation4 [shape = 's32[1]{0}', space=sflag, size = 0x4, scoped, tag = 'scoped memory for tpu_custom_call.1']
    #allocation5 [shape = 'u8[4096]{0}', space=vmem, size = 0x1000, scoped, tag = 'input window, operand 1, single buffered']
    #allocation6 [shape = 's32[1]{0}', space=sflag, size = 0x4, scoped, tag = 'scoped memory for tpu_custom_call.1']
    #allocation7 [shape = 'u8[4096]{0}', space=vmem, size = 0x1000, scoped, tag = 'input window, operand 2, single buffered']
    #allocation8 [shape = 'u8[16384]{0}', space=vmem, size = 0x4000, scoped, tag = 'input window, operand 3, single buffered']
    #allocation9 [shape = 's32[1]{0}', space=sflag, size = 0x4, scoped, tag = 'scoped memory for tpu_custom_call.1']
    #allocation10 [shape = 'u8[16384]{0}', space=vmem, size = 0x4000, scoped, tag = 'input window, operand 4, single buffered']
    #allocation11 [shape = 'u8[16384]{0}', space=vmem, size = 0x4000, scoped, tag = 'input window, operand 5, single buffered']
    #allocation12 [shape = 's32[1]{0}', space=sflag, size = 0x4, scoped, tag = 'scoped memory for tpu_custom_call.1']
    #allocation13 [shape = 'u8[4096]{0}', space=vmem, size = 0x1000, scoped, tag = 'output window, operand 0, single buffered']
    %12 = vsyncpa [#allocation3], 0
    %13 = vsyncpa [#allocation6], 0
    %14 = vsyncpa [#allocation9], 0
    %15 = vsyncpa [#allocation12], 0
    %16 = vsyncpa [#allocation4], 0
    // Predicated region
    $region2: #{tpu_custom_call.1} parent=1 // pred_check
      _
    $region3: #{tpu_custom_call.1} parent=1 // pred_check_branch
      %18 = sbr.rel (0) target = $region5
    $region4: #{tpu_custom_call.1} parent=1 // pred_region
      %20 = vsyncadd [#allocation3], 0
      %s22 = sshll.u32 %s0, 4
      %s23 = int_to_ptr.hbm [resolvable:$true] %s22
      %s24 = sshll.u32 [#allocation2], 4
      %s25 = int_to_ptr.vmem [resolvable:$true] %s24
      %27 = dma.hbm_to_vmem [thread:$0]  %s23, 128, %s25, [#allocation3]
    $region5: #{tpu_custom_call.1} parent=1 // pred_fallthru
      _
    // Predicated region
    $region6: #{tpu_custom_call.1} parent=1 // pred_check
      _
    $region7: #{tpu_custom_call.1} parent=1 // pred_check_branch
      %29 = sbr.rel (0) target = $region9
    $region8: #{tpu_custom_call.1} parent=1 // pred_region
      %31 = vsyncadd [#allocation6], 0
      %s33 = sshll.u32 %s1, 4
      %s34 = int_to_ptr.hbm [resolvable:$true] %s33
      %s35 = sshll.u32 [#allocation5], 4
      %s36 = int_to_ptr.vmem [resolvable:$true] %s35
      %38 = dma.hbm_to_vmem [thread:$0]  %s34, 128, %s36, [#allocation6]
    $region9: #{tpu_custom_call.1} parent=1 // pred_fallthru
      _
    // Predicated region
    $region10: #{tpu_custom_call.1} parent=1 // pred_check
      _
    $region11: #{tpu_custom_call.1} parent=1 // pred_check_branch
      %40 = sbr.rel (0) target = $region13
    $region12: #{tpu_custom_call.1} parent=1 // pred_region
      %42 = vsyncadd [#allocation6], 0
      %s44 = sshll.u32 %s2, 4
      %s45 = int_to_ptr.hbm [resolvable:$true] %s44
      %s46 = sshll.u32 [#allocation7], 4
      %s47 = int_to_ptr.vmem [resolvable:$true] %s46
      %49 = dma.hbm_to_vmem [thread:$0]  %s45, 128, %s47, [#allocation6]
    $region13: #{tpu_custom_call.1} parent=1 // pred_fallthru
      _
    // Predicated region
    $region14: #{tpu_custom_call.1} parent=1 // pred_check
      _
    $region15: #{tpu_custom_call.1} parent=1 // pred_check_branch
      %51 = sbr.rel (0) target = $region17
    $region16: #{tpu_custom_call.1} parent=1 // pred_region
      %53 = vsyncadd [#allocation9], 0
      %s54 = sshll.u32 %s3, 4
      %s55 = int_to_ptr.hbm [resolvable:$true] %s54
      %s56 = sshll.u32 [#allocation8], 4
      %s57 = int_to_ptr.vmem [resolvable:$true] %s56
      %62 = dma.hbm_to_vmem [thread:$0]  %s55, 512, %s57, [#allocation9], 128, 128, 8
    $region17: #{tpu_custom_call.1} parent=1 // pred_fallthru
      _
    // Predicated region
    $region18: #{tpu_custom_call.1} parent=1 // pred_check
      _
    $region19: #{tpu_custom_call.1} parent=1 // pred_check_branch
      %64 = sbr.rel (0) target = $region21
    $region20: #{tpu_custom_call.1} parent=1 // pred_region
      %66 = vsyncadd [#allocation9], 0
      %s67 = sshll.u32 %s4, 4
      %s68 = int_to_ptr.hbm [resolvable:$true] %s67
      %s69 = sshll.u32 [#allocation10], 4
      %s70 = int_to_ptr.vmem [resolvable:$true] %s69
      %75 = dma.hbm_to_vmem [thread:$0]  %s68, 512, %s70, [#allocation9], 128, 128, 8
    $region21: #{tpu_custom_call.1} parent=1 // pred_fallthru
      _
    // Predicated region
    $region22: #{tpu_custom_call.1} parent=1 // pred_check
      _
    $region23: #{tpu_custom_call.1} parent=1 // pred_check_branch
      %77 = sbr.rel (0) target = $region25
    $region24: #{tpu_custom_call.1} parent=1 // pred_region
      %79 = vsyncadd [#allocation12], 0
      %s80 = sshll.u32 %s5, 4
      %s81 = int_to_ptr.hbm [resolvable:$true] %s80
      %s82 = sshll.u32 [#allocation11], 4
      %s83 = int_to_ptr.vmem [resolvable:$true] %s82
      %88 = dma.hbm_to_vmem [thread:$0]  %s81, 512, %s83, [#allocation12], 128, 128, 8
    $region25: #{tpu_custom_call.1} parent=1 // pred_fallthru
      _
    // Predicated region
    $region26: #{tpu_custom_call.1} parent=1 // pred_check
      _
    $region27: #{tpu_custom_call.1} parent=1 // pred_check_branch
      %90 = sbr.rel (0) target = $region29
    $region28: #{tpu_custom_call.1} parent=1 // pred_region
      _
    $region29: #{tpu_custom_call.1} parent=1 // pred_fallthru
      _
    // Predicated region
    $region30: #{tpu_custom_call.1} parent=1 // pred_check
      _
    $region31: #{tpu_custom_call.1} parent=1 // pred_check_branch
      %92 = sbr.rel (0) target = $region33
    $region32: #{tpu_custom_call.1} parent=1 // pred_region
      %94 = dma.done [#allocation3], 128
    $region33: #{tpu_custom_call.1} parent=1 // pred_fallthru
      _
    // Predicated region
    $region34: #{tpu_custom_call.1} parent=1 // pred_check
      _
    $region35: #{tpu_custom_call.1} parent=1 // pred_check_branch
      %96 = sbr.rel (0) target = $region37
    $region36: #{tpu_custom_call.1} parent=1 // pred_region
      %98 = dma.done [#allocation6], 128
    $region37: #{tpu_custom_call.1} parent=1 // pred_fallthru
      _
    // Predicated region
    $region38: #{tpu_custom_call.1} parent=1 // pred_check
      _
    $region39: #{tpu_custom_call.1} parent=1 // pred_check_branch
      %100 = sbr.rel (0) target = $region41
    $region40: #{tpu_custom_call.1} parent=1 // pred_region
      %102 = dma.done [#allocation6], 128
    $region41: #{tpu_custom_call.1} parent=1 // pred_fallthru
      _
    // Predicated region
    $region42: #{tpu_custom_call.1} parent=1 // pred_check
      _
    $region43: #{tpu_custom_call.1} parent=1 // pred_check_branch
      %104 = sbr.rel (0) target = $region45
    $region44: #{tpu_custom_call.1} parent=1 // pred_region
      %106 = dma.done [#allocation9], 512
    $region45: #{tpu_custom_call.1} parent=1 // pred_fallthru
      _
    // Predicated region
    $region46: #{tpu_custom_call.1} parent=1 // pred_check
      _
    $region47: #{tpu_custom_call.1} parent=1 // pred_check_branch
      %108 = sbr.rel (0) target = $region49
    $region48: #{tpu_custom_call.1} parent=1 // pred_region
      %110 = dma.done [#allocation9], 512
    $region49: #{tpu_custom_call.1} parent=1 // pred_fallthru
      _
    // Predicated region
    $region50: #{tpu_custom_call.1} parent=1 // pred_check
      _
    $region51: #{tpu_custom_call.1} parent=1 // pred_check_branch
      %112 = sbr.rel (0) target = $region53
    $region52: #{tpu_custom_call.1} parent=1 // pred_region
      %114 = dma.done [#allocation12], 512
    $region53: #{tpu_custom_call.1} parent=1 // pred_fallthru
      _
    %v115 = vld [vmem:[#allocation2] sm:$0xff]
    %v116 = vld [vmem:[#allocation5] sm:$0xff]
    %v117 = vld [vmem:[#allocation7] sm:$0xff]
    %v118 = vld [vmem:[#allocation8] sm:$0xff]
    %v119 = vld [vmem:[#allocation8 + $0x8] sm:$0xff]
    %v120 = vld [vmem:[#allocation8 + $0x10] sm:$0xff]
    %v121 = vld [vmem:[#allocation8 + $0x18] sm:$0xff]
    %v122 = vld [vmem:[#allocation10] sm:$0xff]
    %v123 = vld [vmem:[#allocation10 + $0x8] sm:$0xff]
    %v124 = vld [vmem:[#allocation10 + $0x10] sm:$0xff]
    %v125 = vld [vmem:[#allocation10 + $0x18] sm:$0xff]
    %vm126 = vcmask 261120
    %v128 = vsel %vm126, %v116, 0
    %130 = vmatpush.msra.mxu0 0.0
    %131 = vmatpush.msra.mxu0 0.0
    %132 = vmatpush.msra.mxu0 0.0
    %133 = vmatpush.msra.mxu0 0.0
    %134 = vmatpush.msra.mxu0 0.0
    %135 = vmatpush.msra.mxu0 0.0
    %136 = vmatpush.msra.mxu0 0.0
    %137 = vmatpush.msra.mxu0 0.0
    %138 = vmatpush.msra.mxu0 0.0
    %139 = vmatpush.msra.mxu0 0.0
    %140 = vmatpush.msra.mxu0 0.0
    %141 = vmatpush.msra.mxu0 0.0
    %142 = vmatpush.msra.mxu0 %v125
    %143 = vmatpush.msra.mxu0 %v124
    %144 = vmatpush.msra.mxu0 %v123
    %145 = vmatpush.msra.mxu0 %v122
    %146 = vmatmul.f32.gmra.mxu0 %v128
    %v147 = vpop.f32.mrf.mxu0
    %v148 = vadd.f32 0.0, %v147
    %149 = vdwg.mxu0
    %v151 = vsel %vm126, %v115, 0
    %153 = vmatpush.msra.mxu0 0.0
    %154 = vmatpush.msra.mxu0 0.0
    %155 = vmatpush.msra.mxu0 0.0
    %156 = vmatpush.msra.mxu0 0.0
    %157 = vmatpush.msra.mxu0 0.0
    %158 = vmatpush.msra.mxu0 0.0
    %159 = vmatpush.msra.mxu0 0.0
    %160 = vmatpush.msra.mxu0 0.0
    %161 = vmatpush.msra.mxu0 0.0
    %162 = vmatpush.msra.mxu0 0.0
    %163 = vmatpush.msra.mxu0 0.0
    %164 = vmatpush.msra.mxu0 0.0
    %165 = vmatpush.msra.mxu0 %v121
    %166 = vmatpush.msra.mxu0 %v120
    %167 = vmatpush.msra.mxu0 %v119
    %168 = vmatpush.msra.mxu0 %v118
    %169 = vmatmul.f32.gmra.mxu0 %v151
    %v170 = vpop.f32.mrf.mxu0
    %v171 = vadd.f32 %v148, %v170
    %172 = vdwg.mxu0
    %v173 = vld [vmem:[#allocation11] sm:$0xff]
    %v174 = vld [vmem:[#allocation11 + $0x8] sm:$0xff]
    %v175 = vld [vmem:[#allocation11 + $0x10] sm:$0xff]
    %v176 = vld [vmem:[#allocation11 + $0x18] sm:$0xff]
    %v178 = vsel %vm126, %v117, 0
    %180 = vmatpush.msra.mxu0 0.0
    %181 = vmatpush.msra.mxu0 0.0
    %182 = vmatpush.msra.mxu0 0.0
    %183 = vmatpush.msra.mxu0 0.0
    %184 = vmatpush.msra.mxu0 0.0
    %185 = vmatpush.msra.mxu0 0.0
    %186 = vmatpush.msra.mxu0 0.0
    %187 = vmatpush.msra.mxu0 0.0
    %188 = vmatpush.msra.mxu0 0.0
    %189 = vmatpush.msra.mxu0 0.0
    %190 = vmatpush.msra.mxu0 0.0
    %191 = vmatpush.msra.mxu0 0.0
    %192 = vmatpush.msra.mxu0 %v176
    %193 = vmatpush.msra.mxu0 %v175
    %194 = vmatpush.msra.mxu0 %v174
    %195 = vmatpush.msra.mxu0 %v173
    %196 = vmatmul.f32.gmra.mxu0 %v178
    %v197 = vpop.f32.mrf.mxu0
    %v198 = vadd.f32 0.0, %v197
    %199 = vdwg.mxu0
    %v200 = vadd.f32 %v171, %v198
    %v201 = vld [vmem:[%s6] sm:$0x1]
    %v203 = vperm.slane %v201, 0
    %v205 = vadd.f32 %v200, %v203
    %v206 = vtanh.pop %v205
    %207 = vst.msk [vmem:[#allocation13] sm:$0xff] %vm126, %v206
    // Predicated region
    $region54: #{tpu_custom_call.1} parent=1 // pred_check
      _
    $region55: #{tpu_custom_call.1} parent=1 // pred_check_branch
      %209 = sbr.rel (0) target = $region57
    $region56: #{tpu_custom_call.1} parent=1 // pred_region
      %211 = vsyncadd [#allocation4], 0
      %s213 = sshll.u32 [#allocation13], 4
      %s214 = int_to_ptr.vmem [resolvable:$true] %s213
      %s215 = sshll.u32 %s7, 4
      %s216 = int_to_ptr.hbm [resolvable:$true] %s215
      %218 = dma.vmem_to_hbm [thread:$0]  %s214, 128, %s216, [#allocation4]
    $region57: #{tpu_custom_call.1} parent=1 // pred_fallthru
      _
    // Predicated region
    $region58: #{tpu_custom_call.1} parent=1 // pred_check
      _
    $region59: #{tpu_custom_call.1} parent=1 // pred_check_branch
      %220 = sbr.rel (0) target = $region61
    $region60: #{tpu_custom_call.1} parent=1 // pred_region
      %222 = dma.done [#allocation4], 128
    $region61: #{tpu_custom_call.1} parent=1 // pred_fallthru
      _
    %223 = vsyncpa [#allocation3], 1
    %224 = vsyncpa [#allocation6], 1
    %225 = vsyncpa [#allocation9], 1
    %226 = vsyncpa [#allocation12], 1
    %227 = vsyncpa [#allocation4], 1

</llo_original>
